<compile_context>
chip_gen: v5e
topology: v5e:2x2
jax: 0.10.0
libtpu: 0.0.40
codegen_flags: <defaults>
</compile_context>

<pallas_src>
import functools

import jax
import jax.numpy as jnp
from jax.experimental import pallas as pl
from jax.experimental.pallas import tpu as pltpu

LN_EPS = 1e-5
GN_EPS = 1e-5


def _round_up(x: int, m: int) -> int:
    return ((x + m - 1) // m) * m


def _vmem_limit_bytes() -> int:
    """Per-generation scoped VMEM limit (cap on v7x's 64 MiB, raise elsewhere)."""
    kind = jax.devices()[0].device_kind.lower()
    if "v7" in kind or "7x" in kind:
        return 48 * 1024 * 1024
    if any(t in kind for t in ("v6", "v5", "v4")):
        return 96 * 1024 * 1024
    return 32 * 1024 * 1024  # conservative fallback (older / unknown chips)


# --------------------------------------------------------------------------
# Kernel A: grouped scatter-sum aggregation
#   h[node_block] = (1+eps) * x[node_block] + sum_{edges with dst in block} msg
# Grid: 1-D over edge chunks (edges pre-grouped by dst node block in XLA).
# Scalar prefetch: nb_of_chunk (chunk -> node block), is_first (init flag).
# --------------------------------------------------------------------------
def _agg_kernel(nbc_ref, isf_ref, dst_ref, msg_ref, x_ref, eps_ref, h_ref):
    del nbc_ref  # used only by the index maps
    c = pl.program_id(0)

    @pl.when(isf_ref[c] == 1)
    def _():
        h_ref[...] = (1.0 + eps_ref[0, 0]) * x_ref[...]

    te = dst_ref.shape[0]
    tn = h_ref.shape[0]
    node_ids = jax.lax.broadcasted_iota(jnp.int32, (te, tn), 1)
    # block-local one-hot; padding edges carry the sentinel TN -> all-zero rows
    dst_oh = (node_ids == dst_ref[...]).astype(jnp.bfloat16)        # (TE, TN)
    # contract over the edge axis; accumulate into the resident (TN, D) tile
    h_ref[...] += jax.lax.dot_general(
        dst_oh, msg_ref[...].astype(jnp.bfloat16),
        (((0,), (0,)), ((), ())), preferred_element_type=jnp.float32)


# --------------------------------------------------------------------------
# Kernel B: GIN MLP + LayerNorm + per-node-block partial GraphNorm statistics
# (single fused segment-stat matmul, no resident accumulators -> "parallel").
# --------------------------------------------------------------------------
def _mlp_ln_stats_kernel(h_ref, bat_ref, w1_ref, b1_ref, w2_ref, b2_ref,
                         lnw_ref, lnb_ref, ln_ref, part_ref):
    h = h_ref[...]                                                  # (TN, D)
    h1 = jnp.maximum(
        jnp.dot(h, w1_ref[...], preferred_element_type=jnp.float32)
        + b1_ref[...], 0.0)
    h2 = (jnp.dot(h1, w2_ref[...], preferred_element_type=jnp.float32)
          + b2_ref[...])

    mu = jnp.mean(h2, axis=-1, keepdims=True)
    var = jnp.mean((h2 - mu) ** 2, axis=-1, keepdims=True)
    ln = (h2 - mu) * jax.lax.rsqrt(var + LN_EPS) * lnw_ref[...] + lnb_ref[...]
    ln_ref[...] = ln

    tn = h.shape[0]
    gp = part_ref.shape[1]
    graph_ids = jax.lax.broadcasted_iota(jnp.int32, (tn, gp), 1)
    oh = (graph_ids == bat_ref[...]).astype(jnp.bfloat16)           # (TN, Gp)
    stats = jnp.concatenate([ln, ln * ln], axis=1).astype(jnp.bfloat16)
    # one MXU push per block: (Gp, 2D) = oh^T @ [ln | ln^2]
    part_ref[0] = jax.lax.dot_general(
        oh, stats, (((0,), (0,)), ((), ())),
        preferred_element_type=jnp.float32)


# --------------------------------------------------------------------------
# Kernel C: GraphNorm apply + optional ReLU + residual.
# Per-graph scale/offset already folded (in XLA) into a (Gp, 2D) table; the
# broadcast back is a single one-hot matmul per node block.
# --------------------------------------------------------------------------
def _graphnorm_kernel(ln_ref, bat_ref, x_ref, so_ref, out_ref, *, last_act, d):
    tn = ln_ref.shape[0]
    gp = so_ref.shape[0]
    graph_ids = jax.lax.broadcasted_iota(jnp.int32, (tn, gp), 1)
    oh = (graph_ids == bat_ref[...]).astype(jnp.bfloat16)           # (TN, Gp)
    so = jax.lax.dot_general(
        oh, so_ref[...].astype(jnp.bfloat16),
        (((1,), (0,)), ((), ())), preferred_element_type=jnp.float32)  # (TN,2D)
    out = so[:, :d] * ln_ref[...] + so[:, d:]
    if last_act:
        out = jnp.maximum(out, 0.0)
    # TODO(synk): dropout is identity at inference; no RNG dropout applied.
    out_ref[...] = out + x_ref[...]


# --------------------------------------------------------------------------
# Wrapper
# --------------------------------------------------------------------------
def gin_block_forward(node_hidden, edge_index, edge_hidden, batch, params,
                      num_graphs: int, last_act: bool = True,
                      node_tile: int = 256, edge_tile: int = 512):
    f32, i32 = jnp.float32, jnp.int32
    N, D = node_hidden.shape
    E = edge_index.shape[1]
    G = num_graphs

    TN = min(_round_up(node_tile, 8), _round_up(N, 8))
    TE = min(_round_up(edge_tile, 8), _round_up(E, 8))
    N_pad = _round_up(N, TN)
    NB = N_pad // TN
    G_pad = max(_round_up(G, 8), 8)
    # TODO(synk): production should pad D to a 128/256 multiple for lane-dense
    # stores (requires masked LayerNorm stats); small-D demo keeps D unpadded,
    # which is legal since every block spans the full feature dim.

    vmem_limit = _vmem_limit_bytes()

    src = edge_index[0].astype(i32)
    dst = edge_index[1].astype(i32)
    bat = batch.astype(i32)

    x = node_hidden.astype(f32)
    x_p = jnp.pad(x, ((0, N_pad - N), (0, 0)))
    bat_p = jnp.pad(bat, (0, N_pad - N), constant_values=G_pad).reshape(N_pad, 1)

    # ---- XLA-side prep for kernel A: gather x[src] + group edges by dst block
    msgs = edge_hidden.astype(f32) + x[src]                          # (E, D)
    blk = dst // TN                                                  # (E,)
    order = jnp.argsort(blk)
    dst_s, blk_s, msgs_s = dst[order], blk[order], msgs[order]

    counts = jax.ops.segment_sum(jnp.ones((E,), i32), blk, num_segments=NB)
    chunks = jnp.maximum((counts + TE - 1) // TE, 1)   # >=1: every tile visited
    coff = jnp.concatenate([jnp.zeros((1,), i32),
                            jnp.cumsum(chunks)[:-1].astype(i32)])
    estart = jnp.concatenate([jnp.zeros((1,), i32),
                              jnp.cumsum(counts)[:-1].astype(i32)])

    C_TOT = pl.cdiv(E, TE) + NB                 # static bound on sum(chunks)
    E_GRP = C_TOT * TE

    rank = jnp.arange(E, dtype=i32) - estart[blk_s]
    pos = coff[blk_s] * TE + rank               # unique rows in grouped buffer
    msgs_g = jnp.zeros((E_GRP, D), f32).at[pos].set(msgs_s)
    dst_loc_g = jnp.full((E_GRP, 1), TN, i32).at[pos, 0].set(dst_s - blk_s * TN)

    chunk_ids = jnp.arange(C_TOT, dtype=i32)
    total_chunks = coff[-1] + chunks[-1]
    nb_raw = (jnp.searchsorted(coff, chunk_ids, side="right") - 1).astype(i32)
    nb_of_chunk = jnp.where(chunk_ids < total_chunks, nb_raw, NB - 1).astype(i32)
    is_first = ((chunk_ids < total_chunks)
                & (chunk_ids == coff[nb_raw])).astype(i32)

    eps = jnp.reshape(params["gin_eps"], (1, 1)).astype(f32)
    w1 = params["w1"].astype(f32)
    b1 = params["b1"].reshape(1, 2 * D).astype(f32)
    w2 = params["w2"].astype(f32)
    b2 = params["b2"].reshape(1, D).astype(f32)
    ln_w = params["ln_w"].reshape(1, D).astype(f32)
    ln_b = params["ln_b"].reshape(1, D).astype(f32)
    gn_a = params["gn_alpha"].reshape(1, D).astype(f32)
    gn_w = params["gn_w"].reshape(1, D).astype(f32)
    gn_b = params["gn_b"].reshape(1, D).astype(f32)

    one = pl.Buffered(1)            # single-buffer constant-index-map inputs

    # ---- Kernel A: grouped scatter-sum aggregation --------------------------
    h = pl.pallas_call(
        _agg_kernel,
        grid_spec=pltpu.PrefetchScalarGridSpec(
            num_scalar_prefetch=2,
            grid=(C_TOT,),
            in_specs=[
                pl.BlockSpec((TE, 1), lambda c, nbc, isf: (c, 0)),        # dst
                pl.BlockSpec((TE, D), lambda c, nbc, isf: (c, 0)),        # msgs
                pl.BlockSpec((TN, D), lambda c, nbc, isf: (nbc[c], 0)),   # x
                pl.BlockSpec(memory_space=pltpu.MemorySpace.SMEM),        # eps
            ],
            out_specs=pl.BlockSpec((TN, D), lambda c, nbc, isf: (nbc[c], 0)),
        ),
        out_shape=jax.ShapeDtypeStruct((N_pad, D), f32),
        compiler_params=pltpu.CompilerParams(
            dimension_semantics=("arbitrary",),
            vmem_limit_bytes=vmem_limit),
    )(nb_of_chunk, is_first, dst_loc_g, msgs_g, x_p, eps)

    # ---- Kernel B: MLP + LayerNorm + per-block GraphNorm partial stats ------
    ln, part = pl.pallas_call(
        _mlp_ln_stats_kernel,
        grid=(NB,),
        in_specs=[
            pl.BlockSpec((TN, D), lambda i: (i, 0)),                       # h
            pl.BlockSpec((TN, 1), lambda i: (i, 0)),                       # batch
            pl.BlockSpec((D, 2 * D), lambda i: (0, 0), pipeline_mode=one), # w1
            pl.BlockSpec((1, 2 * D), lambda i: (0, 0), pipeline_mode=one), # b1
            pl.BlockSpec((2 * D, D), lambda i: (0, 0), pipeline_mode=one), # w2
            pl.BlockSpec((1, D), lambda i: (0, 0), pipeline_mode=one),     # b2
            pl.BlockSpec((1, D), lambda i: (0, 0), pipeline_mode=one),     # ln_w
            pl.BlockSpec((1, D), lambda i: (0, 0), pipeline_mode=one),     # ln_b
        ],
        out_specs=(
            pl.BlockSpec((TN, D), lambda i: (i, 0)),                       # ln
            pl.BlockSpec((1, G_pad, 2 * D), lambda i: (i, 0, 0)),          # stats
        ),
        out_shape=(
            jax.ShapeDtypeStruct((N_pad, D), f32),
            jax.ShapeDtypeStruct((NB, G_pad, 2 * D), f32),
        ),
        compiler_params=pltpu.CompilerParams(
            dimension_semantics=("parallel",),
            vmem_limit_bytes=vmem_limit),
    )(h, bat_p, w1, b1, w2, b2, ln_w, ln_b)

    # ---- XLA: fold per-graph stats into a (G, 2D) scale/offset table --------
    sums = jnp.sum(part, axis=0)                       # (G_pad, 2D)
    s1, s2 = sums[:, :D], sums[:, D:]
    cnt = jax.ops.segment_sum(jnp.ones((N, 1), f32), bat, num_segments=G_pad)
    cnt = jnp.maximum(cnt, 1.0)
    inv = 1.0 / cnt
    gmean = s1 * inv
    mean_sq = s2 * inv
    shift = gn_a * gmean
    # E[(ln - shift)^2] = E[ln^2] - 2*shift*E[ln] + shift^2
    gvar = jnp.maximum(mean_sq - 2.0 * shift * gmean + shift * shift, 0.0)
    scale = gn_w * jax.lax.rsqrt(gvar + GN_EPS)
    off = gn_b - shift * scale
    scaleoff = jnp.concatenate([scale, off], axis=1)   # (G_pad, 2D)

    # ---- Kernel C: GraphNorm apply + ReLU + residual (in place over ln) -----
    out = pl.pallas_call(
        functools.partial(_graphnorm_kernel, last_act=last_act, d=D),
        grid=(NB,),
        in_specs=[
            pl.BlockSpec((TN, D), lambda i: (i, 0)),                       # ln
            pl.BlockSpec((TN, 1), lambda i: (i, 0)),                       # batch
            pl.BlockSpec((TN, D), lambda i: (i, 0)),                       # x
            pl.BlockSpec((G_pad, 2 * D), lambda i: (0, 0), pipeline_mode=one),
        ],
        out_specs=pl.BlockSpec((TN, D), lambda i: (i, 0)),
        out_shape=jax.ShapeDtypeStruct((N_pad, D), f32),
        input_output_aliases={0: 0},
        compiler_params=pltpu.CompilerParams(
            dimension_semantics=("parallel",),
            vmem_limit_bytes=vmem_limit),
    )(ln, bat_p, x_p, scaleoff)

    return out[:N]


# --------------------------------------------------------------------------
# Pure-JAX reference mirroring the PyTorch forward.
# --------------------------------------------------------------------------
def gin_block_reference(node_hidden, edge_index, edge_hidden, batch, params,
                        num_graphs: int, last_act: bool = True):
    N, D = node_hidden.shape
    src, dst = edge_index[0], edge_index[1]
    msgs = edge_hidden + node_hidden[src]
    agg = jnp.zeros_like(node_hidden).at[dst].add(msgs)
    h = agg + (1.0 + params["gin_eps"]) * node_hidden
    h = jnp.maximum(h @ params["w1"] + params["b1"], 0.0) @ params["w2"] + params["b2"]
    mu = h.mean(-1, keepdims=True)
    var = ((h - mu) ** 2).mean(-1, keepdims=True)
    ln = (h - mu) / jnp.sqrt(var + LN_EPS) * params["ln_w"] + params["ln_b"]
    counts = jax.ops.segment_sum(jnp.ones((N, 1)), batch, num_graphs)
    counts = jnp.maximum(counts, 1.0)
    gmean = jax.ops.segment_sum(ln, batch, num_graphs) / counts
    sub = ln - gmean[batch] * params["gn_alpha"]
    gvar = jax.ops.segment_sum(sub * sub, batch, num_graphs) / counts
    out = params["gn_w"] * sub / jnp.sqrt(gvar[batch] + GN_EPS) + params["gn_b"]
    if last_act:
        out = jnp.maximum(out, 0.0)
    return out + node_hidden


def init_params(key, embed_dim):
    D = embed_dim
    ks = jax.random.split(key, 8)
    scale1 = 1.0 / jnp.sqrt(D)
    scale2 = 1.0 / jnp.sqrt(2 * D)
    return {
        "gin_eps": jnp.float32(0.1),
        "w1": jax.random.normal(ks[0], (D, 2 * D), jnp.float32) * scale1,
        "b1": jax.random.normal(ks[1], (2 * D,), jnp.float32) * scale1,
        "w2": jax.random.normal(ks[2], (2 * D, D), jnp.float32) * scale2,
        "b2": jax.random.normal(ks[3], (D,), jnp.float32) * scale2,
        "ln_w": jnp.ones((D,), jnp.float32),
        "ln_b": jnp.zeros((D,), jnp.float32),
        "gn_alpha": jnp.ones((D,), jnp.float32),
        "gn_w": jnp.ones((D,), jnp.float32),
        "gn_b": jnp.zeros((D,), jnp.float32),
    }


if __name__ == "__main__":
    key = jax.random.PRNGKey(0)
    k_param, k_node, k_edge, k_src, k_dst = jax.random.split(key, 5)

    N, E, D, G = 16, 48, 32, 2          # nodes, edges, embed_dim, graphs
    last_act = True

    params = init_params(k_param, D)
    node_hidden = jax.random.normal(k_node, (N, D), jnp.float32)
    edge_hidden = jax.random.normal(k_edge, (E, D), jnp.float32)
    src = jax.random.randint(k_src, (E,), 0, N, dtype=jnp.int32)
    dst = jax.random.randint(k_dst, (E,), 0, N, dtype=jnp.int32)
    edge_index = jnp.stack([src, dst], axis=0)                     # (2, E)
    batch = jnp.concatenate([jnp.zeros((N // 2,), jnp.int32),
                             jnp.ones((N - N // 2,), jnp.int32)])  # (N,)

    # Tiny tiles so the chunked edge grid, per-block stats, and accumulator
    # revisits are actually exercised; production defaults are 256 / 512 rows.
    out = gin_block_forward(node_hidden, edge_index, edge_hidden, batch,
                            params, num_graphs=G, last_act=last_act,
                            node_tile=8, edge_tile=16)
    out = jax.block_until_ready(out)

    ref = gin_block_reference(node_hidden, edge_index, edge_hidden, batch,
                              params, num_graphs=G, last_act=last_act)
    assert out.shape == (N, D)
    # bf16 MXU passes (default precision, per perf review) => looser tolerance
    # than an all-f32 HIGHEST reference.
    err = jnp.max(jnp.abs(out - ref))
    assert jnp.allclose(out, ref, rtol=5e-2, atol=5e-2), f"max abs err {err}"

    print("KERNEL_OK")
</pallas_src>

<mosaic_0001>
module attributes {stable_mosaic.version = 11 : i64} {
  func.func @_agg_kernel(%arg0: i32, %arg1: memref<5xi32, #tpu.memory_space<smem>>, %arg2: memref<5xi32, #tpu.memory_space<smem>>, %arg3: memref<16x1xi32, #tpu.memory_space<vmem>>, %arg4: memref<16x32xf32, #tpu.memory_space<vmem>>, %arg5: memref<8x32xf32, #tpu.memory_space<vmem>>, %arg6: memref<1x1xf32, #tpu.memory_space<smem>>, %arg7: memref<8x32xf32, #tpu.memory_space<vmem>>) attributes {dimension_semantics = [#tpu.dimension_semantics<arbitrary>], iteration_bounds = array<i64: 5>, scalar_prefetch = 2 : i64, scratch_operands = 0 : i64, tpu.core_type = #tpu.core_type<tc>, window_params = [{transform_indices = @transform_0, window_bounds = array<i64: 16, 1>}, {transform_indices = @transform_1, window_bounds = array<i64: 16, 32>}, {transform_indices = @transform_2, window_bounds = array<i64: 8, 32>}, {transform_indices = @transform_3, window_bounds = array<i64: 1, 1>}, {transform_indices = @transform_4, window_bounds = array<i64: 8, 32>}]} {
    %0 = arith.index_cast %arg0 : i32 to index
    %1 = memref.load %arg2[%0] : memref<5xi32, #tpu.memory_space<smem>>
    %c1_i32 = arith.constant 1 : i32
    %2 = arith.cmpi eq, %1, %c1_i32 : i32
    %3 = arith.extui %2 : i1 to i32
    %c0_i32 = arith.constant 0 : i32
    %4 = arith.cmpi ne, %3, %c0_i32 : i32
    scf.if %4 {
      %c0_7 = arith.constant 0 : index
      %c0_8 = arith.constant 0 : index
      %18 = memref.load %arg6[%c0_7, %c0_8] : memref<1x1xf32, #tpu.memory_space<smem>>
      %cst_9 = arith.constant 1.000000e+00 : f32
      %19 = arith.addf %cst_9, %18 : f32
      %c0_10 = arith.constant 0 : index
      %c0_11 = arith.constant 0 : index
      %20 = vector.load %arg5[%c0_10, %c0_11] : memref<8x32xf32, #tpu.memory_space<vmem>>, vector<8x32xf32>
      %21 = vector.broadcast %19 : f32 to vector<8x32xf32>
      %22 = arith.mulf %21, %20 : vector<8x32xf32>
      %c0_12 = arith.constant 0 : index
      %c0_13 = arith.constant 0 : index
      %23 = vector.load %arg7[%c0_12, %c0_13] : memref<8x32xf32, #tpu.memory_space<vmem>>, vector<8x32xf32>
      tpu.vector_store %arg7[%c0_12, %c0_13], %22 {strides = array<i32>} : memref<8x32xf32, #tpu.memory_space<vmem>>, vector<8x32xf32>,
    } else {
    }
    %5 = tpu.iota {dimensions = array<i32: 1>} : vector<16x8xi32>
    %c0 = arith.constant 0 : index
    %c0_0 = arith.constant 0 : index
    %6 = vector.load %arg3[%c0, %c0_0] : memref<16x1xi32, #tpu.memory_space<vmem>>, vector<16x1xi32>
    %7 = vector.broadcast %6 : vector<16x1xi32> to vector<16x8xi32>
    %8 = arith.cmpi eq, %5, %7 : vector<16x8xi32>
    %9 = arith.extui %8 : vector<16x8xi1> to vector<16x8xi32>
    %10 = arith.sitofp %9 : vector<16x8xi32> to vector<16x8xf32>
    %11 = arith.truncf %10 : vector<16x8xf32> to vector<16x8xbf16>
    %c0_1 = arith.constant 0 : index
    %c0_2 = arith.constant 0 : index
    %12 = vector.load %arg7[%c0_1, %c0_2] : memref<8x32xf32, #tpu.memory_space<vmem>>, vector<8x32xf32>
    %c0_3 = arith.constant 0 : index
    %c0_4 = arith.constant 0 : index
    %13 = vector.load %arg4[%c0_3, %c0_4] : memref<16x32xf32, #tpu.memory_space<vmem>>, vector<16x32xf32>
    %14 = arith.truncf %13 : vector<16x32xf32> to vector<16x32xbf16>
    %cst = arith.constant dense<0.000000e+00> : vector<8x32xf32>
    %15 = tpu.matmul %11, %14, %cst {dimension_numbers = #tpu.dot_dimension_numbers<[0], [0], [1], [1], [0, 1, 1, 1], [], []>} : vector<16x8xbf16>, vector<16x32xbf16>, vector<8x32xf32> -> vector<8x32xf32>
    %16 = arith.addf %12, %15 : vector<8x32xf32>
    %c0_5 = arith.constant 0 : index
    %c0_6 = arith.constant 0 : index
    %17 = vector.load %arg7[%c0_5, %c0_6] : memref<8x32xf32, #tpu.memory_space<vmem>>, vector<8x32xf32>
    tpu.vector_store %arg7[%c0_5, %c0_6], %16 {strides = array<i32>} : memref<8x32xf32, #tpu.memory_space<vmem>>, vector<8x32xf32>,
    return
  }
  func.func @transform_0(%arg0: i32, %arg1: memref<5xi32, #tpu.memory_space<smem>>, %arg2: memref<5xi32, #tpu.memory_space<smem>>) -> (i32, i32) {
    %c0_i32 = arith.constant 0 : i32
    %c0_i32_0 = arith.constant 0 : i32
    return %arg0, %c0_i32 : i32, i32
  }
  func.func @transform_1(%arg0: i32, %arg1: memref<5xi32, #tpu.memory_space<smem>>, %arg2: memref<5xi32, #tpu.memory_space<smem>>) -> (i32, i32) {
    %c0_i32 = arith.constant 0 : i32
    %c0_i32_0 = arith.constant 0 : i32
    return %arg0, %c0_i32 : i32, i32
  }
  func.func @transform_2(%arg0: i32, %arg1: memref<5xi32, #tpu.memory_space<smem>>, %arg2: memref<5xi32, #tpu.memory_space<smem>>) -> (i32, i32) {
    %0 = arith.index_cast %arg0 : i32 to index
    %1 = memref.load %arg1[%0] : memref<5xi32, #tpu.memory_space<smem>>
    %c0_i32 = arith.constant 0 : i32
    %c0_i32_0 = arith.constant 0 : i32
    return %1, %c0_i32 : i32, i32
  }
  func.func @transform_3(%arg0: i32, %arg1: memref<5xi32, #tpu.memory_space<smem>>, %arg2: memref<5xi32, #tpu.memory_space<smem>>) -> (i32, i32) {
    %c0_i32 = arith.constant 0 : i32
    %c0_i32_0 = arith.constant 0 : i32
    %c0_i32_1 = arith.constant 0 : i32
    return %c0_i32, %c0_i32_0 : i32, i32
  }
  func.func @transform_4(%arg0: i32, %arg1: memref<5xi32, #tpu.memory_space<smem>>, %arg2: memref<5xi32, #tpu.memory_space<smem>>) -> (i32, i32) {
    %0 = arith.index_cast %arg0 : i32 to index
    %1 = memref.load %arg1[%0] : memref<5xi32, #tpu.memory_space<smem>>
    %c0_i32 = arith.constant 0 : i32
    %c0_i32_0 = arith.constant 0 : i32
    return %1, %c0_i32 : i32, i32
  }
}

</mosaic_0001>

<llo_original>
// kernel: tpu_custom_call.1
$region0: #{tpu_custom_call.1}
  #allocation0 [shape = 'u32[]', space=smem, size = 0x4, offset = 0x4, fixed_abs, tag = 'smem constant byte address 0x4 - core index']
  #allocation1 [shape = 'u32[72,128]{1,0:T(1,128)}', space=vmem, size = 0x9000, scoped, tag = 'internal scratch']
  #allocation2 [shape = 's32[1]{0}', space=sflag, size = 0x4, scoped, tag = 'scoped memory for tpu_custom_call.1']
  #allocation3 [shape = 'u8[512]{0}', space=smem, size = 0x200, scoped, tag = 'prefetched SMEM operand 0']
  #allocation4 [shape = 'u8[512]{0}', space=smem, size = 0x200, scoped, tag = 'prefetched SMEM operand 1']
  #allocation5 [shape = 'f32[1,1]{1,0:T(1,128)S(6)}', space=smem, size = 0x200, scoped, tag = 'scoped memory for tpu_custom_call.1']
  %s0 = inlined_call_operand.vmem [shape: s32[5], index: 0, kind: input, shape index: {}]
  %s1 = inlined_call_operand.vmem [shape: s32[5], index: 1, kind: input, shape index: {}]
  %s2 = inlined_call_operand.vmem [shape: s32[80,1], index: 2, kind: input, shape index: {}]
  %s3 = inlined_call_operand.vmem [shape: f32[80,32], index: 3, kind: input, shape index: {}]
  %s4 = inlined_call_operand.vmem [shape: f32[16,32], index: 4, kind: input, shape index: {}]
  %s5 = inlined_call_operand.<no memory space> [shape: f32[1,1], index: 5, kind: input, shape index: {}]
  %s6 = inlined_call_operand.hbm [shape: f32[16,32], index: 6, kind: output, shape index: {}]
  %s7 = sld [smem:[#allocation0]]
  $region53: #{tpu_custom_call.1} parent=0
    _
  %s9 = ssub.s32 1, %s7
  %s10 = scalar_select 0, %s9, %s7
  %s12 = sshll.u32 %s0, 4
  %s13 = int_to_ptr.vmem [resolvable:$true] %s12
  %15 = dma.vmem_to_smem %s13, 16, [#allocation3], [#allocation2]
  %s17 = sshll.u32 %s1, 4
  %s18 = int_to_ptr.vmem [resolvable:$true] %s17
  %20 = dma.vmem_to_smem %s18, 16, [#allocation4], [#allocation2]
  %21 = sst [smem:[#allocation5]] %s5
  %23 = dma.done [#allocation2], 32
  %24 = sfence
  $region1: #{tpu_custom_call.1} parent=0
    #allocation6 [shape = 'u8[8192]{0}', space=vmem, size = 0x2000, scoped, tag = 'output window, operand 0']
    #allocation7 [shape = 's32[2]{0}', space=sflag, size = 0x8, scoped, tag = 'scoped memory for tpu_custom_call.1']
    %25 = vsyncpa [#allocation7], 0
    %s26 = scalar_lea.sflag [#allocation7], 1
    %27 = vsyncpa %s26, 0
    loop: start=0, step=1, limit=7
    $region2: #{tpu_custom_call.1} parent=1 // loop_pre_header
      _
    $region3: #{tpu_custom_call.1} parent=1 // loop_header
      %s29 = sphi 0, %s33
      %p30 = scmp.ge.s32.totalorder %s29, 7
      %s39 = sphi 0, %s41
      %s42 = sphi 0, %s39
      %s43 = sphi 0, %s42
      %s59 = sphi 0, %s43
      %s65 = sphi 0, %s67
      %s68 = sphi 0, %s65
      %s69 = sphi 0, %s68
      %s85 = sphi 0, %s69
      %s93 = sphi 0, %s95
      %s96 = sphi 0, %s93
      %s97 = sphi 0, %s96
      %s113 = sphi 0, %s97
      %s117 = sphi 0, %s117
      %s119 = sphi 0, %s117
      %s120 = sphi 0, %s119
      %s134 = sphi 0, %s120
      %s142 = sphi 0, %s144
      %s145 = sphi 0, %s142
      %s146 = sphi 0, %s145
      %s162 = sphi 0, %s146
    $region4: #{tpu_custom_call.1} parent=1 // loop_header_branch
      %32 = sbr.rel (%p30) target = $region8
    $region5: #{tpu_custom_call.1} parent=1 // loop_body
      %s34 = ssub.s32 %s29, 1
      %s35 = ssub.s32 %s29, 2
      %s36 = sadd.s32 %s29, 1
      %s37 = ssub.s32 %s29, %s36
      %p38 = scmp.eq.s32.totalorder %s37, 0
      %s40 = sadd.s32 %s39, 1
      %s41 = scalar_select %p38, %s39, %s40
      %p44 = pneg %p38
      %p45 = scmp.eq.s32.totalorder %s29, 4
      %p46 = por %p44, %p45
      %p47 = scmp.ne.s32.totalorder %s39, %s42
      %p48 = scmp.eq.s32.totalorder %s29, 0
      %p49 = por %p47, %p48
      %p50 = scmp.ne.s32.totalorder %s39, %s42
      %p51 = scmp.eq.s32.totalorder %s34, 4
      %p52 = por %p50, %p51
      %p53 = scmp.ne.s32.totalorder %s42, %s43
      %p54 = scmp.eq.s32.totalorder %s34, 0
      %p55 = por %p53, %p54
      %p56 = scmp.ne.s32.totalorder %s42, %s43
      %p57 = scmp.eq.s32.totalorder %s35, 4
      %p58 = por %p56, %p57
      %p60 = scmp.ne.s32.totalorder %s43, %s59
      %p61 = scmp.eq.s32.totalorder %s35, 0
      %p62 = por %p60, %p61
      %s63 = ssub.s32 %s29, %s36
      %p64 = scmp.eq.s32.totalorder %s63, 0
      %s66 = sadd.s32 %s65, 1
      %s67 = scalar_select %p64, %s65, %s66
      %p70 = pneg %p64
      %p71 = scmp.eq.s32.totalorder %s29, 4
      %p72 = por %p70, %p71
      %p73 = scmp.ne.s32.totalorder %s65, %s68
      %p74 = scmp.eq.s32.totalorder %s29, 0
      %p75 = por %p73, %p74
      %p76 = scmp.ne.s32.totalorder %s65, %s68
      %p77 = scmp.eq.s32.totalorder %s34, 4
      %p78 = por %p76, %p77
      %p79 = scmp.ne.s32.totalorder %s68, %s69
      %p80 = scmp.eq.s32.totalorder %s34, 0
      %p81 = por %p79, %p80
      %p82 = scmp.ne.s32.totalorder %s68, %s69
      %p83 = scmp.eq.s32.totalorder %s35, 4
      %p84 = por %p82, %p83
      %p86 = scmp.ne.s32.totalorder %s69, %s85
      %p87 = scmp.eq.s32.totalorder %s35, 0
      %p88 = por %p86, %p87
      %s89 = sld [smem:[#allocation3 + %s29]]
      %s90 = sld [smem:[#allocation3 + %s36]]
      %s91 = ssub.s32 %s89, %s90
      %p92 = scmp.eq.s32.totalorder %s91, 0
      %s94 = sadd.s32 %s93, 1
      %s95 = scalar_select %p92, %s93, %s94
      %p98 = pneg %p92
      %p99 = scmp.eq.s32.totalorder %s29, 4
      %p100 = por %p98, %p99
      %p101 = scmp.ne.s32.totalorder %s93, %s96
      %p102 = scmp.eq.s32.totalorder %s29, 0
      %p103 = por %p101, %p102
      %p104 = scmp.ne.s32.totalorder %s93, %s96
      %p105 = scmp.eq.s32.totalorder %s34, 4
      %p106 = por %p104, %p105
      %p107 = scmp.ne.s32.totalorder %s96, %s97
      %p108 = scmp.eq.s32.totalorder %s34, 0
      %p109 = por %p107, %p108
      %p110 = scmp.ne.s32.totalorder %s96, %s97
      %p111 = scmp.eq.s32.totalorder %s35, 4
      %p112 = por %p110, %p111
      %p114 = scmp.ne.s32.totalorder %s97, %s113
      %p115 = scmp.eq.s32.totalorder %s35, 0
      %p116 = por %p114, %p115
      %s118 = sadd.s32 %s117, 1
      %p121 = scmp.eq.s32.totalorder %s29, 4
      %p122 = scmp.ne.s32.totalorder %s117, %s119
      %p123 = scmp.eq.s32.totalorder %s29, 0
      %p124 = por %p122, %p123
      %p125 = scmp.ne.s32.totalorder %s117, %s119
      %p126 = scmp.eq.s32.totalorder %s34, 4
      %p127 = por %p125, %p126
      %p128 = scmp.ne.s32.totalorder %s119, %s120
      %p129 = scmp.eq.s32.totalorder %s34, 0
      %p130 = por %p128, %p129
      %p131 = scmp.ne.s32.totalorder %s119, %s120
      %p132 = scmp.eq.s32.totalorder %s35, 4
      %p133 = por %p131, %p132
      %p135 = scmp.ne.s32.totalorder %s120, %s134
      %p136 = scmp.eq.s32.totalorder %s35, 0
      %p137 = por %p135, %p136
      %s138 = sld [smem:[#allocation3 + %s29]]
      %s139 = sld [smem:[#allocation3 + %s36]]
      %s140 = ssub.s32 %s138, %s139
      %p141 = scmp.eq.s32.totalorder %s140, 0
      %s143 = sadd.s32 %s142, 1
      %s144 = scalar_select %p141, %s142, %s143
      %p147 = pneg %p141
      %p148 = scmp.eq.s32.totalorder %s29, 4
      %p149 = por %p147, %p148
      %p150 = scmp.ne.s32.totalorder %s142, %s145
      %p151 = scmp.eq.s32.totalorder %s29, 0
      %p152 = por %p150, %p151
      %p153 = scmp.ne.s32.totalorder %s142, %s145
      %p154 = scmp.eq.s32.totalorder %s34, 4
      %p155 = por %p153, %p154
      %p156 = scmp.ne.s32.totalorder %s145, %s146
      %p157 = scmp.eq.s32.totalorder %s34, 0
      %p158 = por %p156, %p157
      %p159 = scmp.ne.s32.totalorder %s145, %s146
      %p160 = scmp.eq.s32.totalorder %s35, 4
      %p161 = por %p159, %p160
      %p163 = scmp.ne.s32.totalorder %s146, %s162
      %p164 = scmp.eq.s32.totalorder %s35, 0
      %p165 = por %p163, %p164
      %p166 = scmp.le.s32.totalorder 1, %s29
      %p167 = scmp.lt.s32.totalorder %s29, 6
      %p168 = pnand %p166, %p167
      %p169 = pneg %p168
      // Predicated region
      $region9: #{tpu_custom_call.1} parent=5 // pred_check
        _
      $region10: #{tpu_custom_call.1} parent=5 // pred_check_branch
        %171 = sbr.rel (%p168) target = $region12
      $region11: #{tpu_custom_call.1} parent=5 // pred_region
        %s172 = ssub.s32 %s29, 1
        // Predicated region
        $region13: #{tpu_custom_call.1} parent=11 // pred_check
          %p173 = pneg %p130
        $region14: #{tpu_custom_call.1} parent=11 // pred_check_branch
          %175 = sbr.rel (%p173) target = $region16
        $region15: #{tpu_custom_call.1} parent=11 // pred_region
          _
        $region16: #{tpu_custom_call.1} parent=11 // pred_fallthru
          _
      $region12: #{tpu_custom_call.1} parent=5 // pred_fallthru
        _
      %p176 = scmp.lt.s32.totalorder %s29, 5
      // Predicated region
      $region17: #{tpu_custom_call.1} parent=5 // pred_check
        %p177 = pneg %p176
      $region18: #{tpu_custom_call.1} parent=5 // pred_check_branch
        %179 = sbr.rel (%p177) target = $region20
      $region19: #{tpu_custom_call.1} parent=5 // pred_region
        // Predicated region
        $region21: #{tpu_custom_call.1} parent=19 // pred_check
          %p180 = pneg %p49
        $region22: #{tpu_custom_call.1} parent=19 // pred_check_branch
          %182 = sbr.rel (%p180) target = $region24
        $region23: #{tpu_custom_call.1} parent=19 // pred_region
          %s183 = smul.u32 2, %s29
          %p184 = scmp.lt.s32.totalorder %s183, 9
          %s185 = scalar_select %p184, %s183, 9
          %s186 = smul.addr %s185, 8
          %s187 = scalar_lea.vmem %s2, %s186
          %s188 = smul.u32 2, %s29
        $region24: #{tpu_custom_call.1} parent=19 // pred_fallthru
          _
        // Predicated region
        $region25: #{tpu_custom_call.1} parent=19 // pred_check
          %p189 = pneg %p75
        $region26: #{tpu_custom_call.1} parent=19 // pred_check_branch
          %191 = sbr.rel (%p189) target = $region28
        $region27: #{tpu_custom_call.1} parent=19 // pred_region
          %s192 = smul.u32 2, %s29
          %p193 = scmp.lt.s32.totalorder %s192, 9
          %s194 = scalar_select %p193, %s192, 9
          %s195 = smul.addr %s194, 8
          %s196 = scalar_lea.vmem %s3, %s195
          %s197 = smul.u32 2, %s29
        $region28: #{tpu_custom_call.1} parent=19 // pred_fallthru
          _
        // Predicated region
        $region29: #{tpu_custom_call.1} parent=19 // pred_check
          %p198 = pneg %p103
        $region30: #{tpu_custom_call.1} parent=19 // pred_check_branch
          %200 = sbr.rel (%p198) target = $region32
        $region31: #{tpu_custom_call.1} parent=19 // pred_region
          %s201 = sld [smem:[#allocation3 + %s29]]
          %p202 = scmp.lt.s32.totalorder %s201, 1
          %s203 = scalar_select %p202, %s201, 1
          %s204 = smul.addr %s203, 8
          %s205 = scalar_lea.vmem %s4, %s204
          %s206 = sld [smem:[#allocation3 + %s29]]
        $region32: #{tpu_custom_call.1} parent=19 // pred_fallthru
          _
      $region20: #{tpu_custom_call.1} parent=5 // pred_fallthru
        _
      %p207 = scmp.le.s32.totalorder 1, %s29
      %p208 = scmp.lt.s32.totalorder %s29, 6
      %p209 = pnand %p207, %p208
      %p210 = pneg %p209
      // Predicated region
      $region33: #{tpu_custom_call.1} parent=5 // pred_check
        _
      $region34: #{tpu_custom_call.1} parent=5 // pred_check_branch
        %212 = sbr.rel (%p209) target = $region36
      $region35: #{tpu_custom_call.1} parent=5 // pred_region
        %s213 = ssub.s32 %s29, 1
        %s214 = smul.u32 2, %s34
        %p215 = scmp.lt.s32.totalorder %s214, 9
        %s216 = scalar_select %p215, %s214, 9
        %s217 = smul.addr %s216, 8
        %s218 = scalar_lea.vmem %s2, %s217
        %p219 = pneg %p55
        %p220 = pneg %p52
        %s221 = smul.u32 2, %s34
        %p222 = scmp.lt.s32.totalorder %s221, 9
        %s223 = scalar_select %p222, %s221, 9
        %s224 = smul.addr %s223, 8
        %s225 = scalar_lea.vmem %s3, %s224
        %p226 = pneg %p81
        %p227 = pneg %p78
        %s228 = sld [smem:[#allocation3 + %s34]]
        %p229 = scmp.lt.s32.totalorder %s228, 1
        %s230 = scalar_select %p229, %s228, 1
        %s231 = smul.addr %s230, 8
        %s232 = scalar_lea.vmem %s4, %s231
        %p233 = pneg %p109
        %p234 = pneg %p106
        %p235 = pneg %p130
        %p236 = pneg %p127
        %p237 = pneg %p158
        %p238 = pneg %p155
        %s239 = sand.u32 %s145, 1
        %s240 = scalar_lea.sflag [#allocation7], %s239
        %s241 = sand.u32 %s145, 1
        %s242 = smul.addr %s241, 8
        %s243 = scalar_lea.vmem [#allocation6], %s242
        %s244 = smul.u32 2, %s34
        %p245 = scmp.lt.s32.totalorder %s244, 9
        %s246 = scalar_select %p245, %s244, 9
        %s247 = smul.addr %s246, 8
        %s248 = scalar_lea.vmem %s2, %s247
        %s249 = smul.u32 2, %s34
        %s250 = smul.u32 2, %s34
        %p251 = scmp.lt.s32.totalorder %s250, 9
        %s252 = scalar_select %p251, %s250, 9
        %s253 = smul.addr %s252, 8
        %s254 = scalar_lea.vmem %s3, %s253
        %s255 = smul.u32 2, %s34
        %s256 = sld [smem:[#allocation3 + %s34]]
        %p257 = scmp.lt.s32.totalorder %s256, 1
        %s258 = scalar_select %p257, %s256, 1
        %s259 = smul.addr %s258, 8
        %s260 = scalar_lea.vmem %s4, %s259
        %s261 = sld [smem:[#allocation3 + %s34]]
        %s262 = sld [smem:[#allocation3 + %s34]]
        %s264 = sld [smem:[#allocation4 + %s34]]
        %p265 = scmp.eq.s32.totalorder %s264, 1
        // Predicated region
        $region37: #{tpu_custom_call.1} parent=35 // pred_check
          %p266 = pneg %p265
        $region38: #{tpu_custom_call.1} parent=35 // pred_check_branch
          %268 = sbr.rel (%p266) target = $region40
        $region39: #{tpu_custom_call.1} parent=35 // pred_region
          %s269 = sld [smem:[#allocation5]]
          %s270 = sadd.f32 %s269, 1.0
          %v271 = vld [vmem:[%s260] sm:$0xff]
          %v272 = vstv %s270
          %v273 = vmul.f32 %v272, %v271
          %vm274 = vcmask 261120
          %275 = vst.msk [vmem:[%s243] sm:$0xff] %vm274, %v273
        $region40: #{tpu_custom_call.1} parent=35 // pred_fallthru
          _
        %v276 = vlaneseq
        %v277 = vand.u32 %v276, 127
        %v278 = vld [vmem:[%s248] sm:$0xff]
        %v279 = vld [vmem:[%s248 + $0x8] sm:$0xff]
        %280 = vset.pattern.permute.xlu0 0
        %281 = vperm.xlu0 %280, %v278
        %v282 = vpop.permute.xlu0 %281
        %283 = vset.pattern.permute.xlu0 0
        %284 = vperm.xlu0 %283, %v279
        %v285 = vpop.permute.xlu0 %284
        %vm286 = vcmp.eq.s32.totalorder %v277, %v282
        %vm287 = vcmp.eq.s32.totalorder %v277, %v285
        %v288 = vsel %vm286, 1, 0
        %v289 = vsel %vm287, 1, 0
        %v290 = vcvt.s32.f32 %v288
        %v291 = vcvt.s32.f32 %v289
        %v292 = vpack.c.bf16 %v291, %v290
        %v293 = vld [vmem:[%s243] sm:$0xff]
        %v294 = vld [vmem:[%s254] sm:$0xff]
        %v295 = vld [vmem:[%s254 + $0x8] sm:$0xff]
        %v296 = vpack.c.bf16 %v295, %v294
        %297 = vxpose.xlu0.c.b16.start [1/8] %v292, 128
        %298 = vxpose.xlu0.c.b16.cont [2/8] 0, 128
        %299 = vxpose.xlu0.c.b16.cont [3/8] 0, 128
        %300 = vxpose.xlu0.c.b16.cont [4/8] 0, 128
        %301 = vxpose.xlu0.c.b16.cont [5/8] 0, 128
        %302 = vxpose.xlu0.c.b16.cont [6/8] 0, 128
        %303 = vxpose.xlu0.c.b16.cont [7/8] 0, 128
        %304 = vxpose.xlu0.c.b16.end [8/8] 0, 128
        %v305 = vpop.trf.xlu0
        %v306 = vpop.trf.xlu0
        %v307 = vpop.trf.xlu0
        %v308 = vpop.trf.xlu0
        %v309 = vpop.trf.xlu0
        %v310 = vpop.trf.xlu0
        %v311 = vpop.trf.xlu0
        %v312 = vpop.trf.xlu0
        %vm313 = vcmask 130048
        %v315 = vsel %vm313, %v305, 0
        %317 = vmatpush.bf16.msra.mxu0 0
        %318 = vmatpush.bf16.msra.mxu0 0
        %319 = vmatpush.bf16.msra.mxu0 0
        %320 = vmatpush.bf16.msra.mxu0 0
        %321 = vmatpush.bf16.msra.mxu0 0
        %322 = vmatpush.bf16.msra.mxu0 0
        %323 = vmatpush.bf16.msra.mxu0 0
        %324 = vmatpush.bf16.msra.mxu0 %v296
        %325 = vmatmul.bf16.gmra.mxu0 %v315
        %v326 = vpop.f32.mrf.mxu0
        %v327 = vadd.f32 0.0, %v326
        %v328 = vpop.f32.mrf.mxu0
        %329 = vdwg.mxu0
        %v330 = vadd.f32 %v293, %v327
        %vm331 = vcmask 261120
        %332 = vst.msk [vmem:[%s243] sm:$0xff] %vm331, %v330
        %s333 = sand.u32 %s145, 1
        %s334 = scalar_lea.sflag [#allocation7], %s333
        %s335 = sand.u32 %s145, 1
        %s336 = smul.addr %s335, 8
        %s337 = scalar_lea.vmem [#allocation6], %s336
        // Predicated region
        $region41: #{tpu_custom_call.1} parent=35 // pred_check
          %p338 = pneg %p155
        $region42: #{tpu_custom_call.1} parent=35 // pred_check_branch
          %340 = sbr.rel (%p338) target = $region44
        $region43: #{tpu_custom_call.1} parent=35 // pred_region
          %s341 = sld [smem:[#allocation3 + %s34]]
          %343 = vsyncadd %s334, 0
          %s344 = smul.addr %s341, 8
          %s345 = scalar_lea.hbm %s6, %s344
          %s347 = sshll.u32 %s337, 4
          %s348 = int_to_ptr.vmem [resolvable:$true] %s347
          %s349 = sshll.u32 %s345, 4
          %s350 = int_to_ptr.hbm [resolvable:$true] %s349
          %352 = dma.vmem_to_hbm [thread:$0]  %s348, 128, %s350, %s334
        $region44: #{tpu_custom_call.1} parent=35 // pred_fallthru
          _
      $region36: #{tpu_custom_call.1} parent=5 // pred_fallthru
        _
      %p353 = scmp.le.s32.totalorder 2, %s29
      // Predicated region
      $region45: #{tpu_custom_call.1} parent=5 // pred_check
        %p354 = pneg %p353
      $region46: #{tpu_custom_call.1} parent=5 // pred_check_branch
        %356 = sbr.rel (%p354) target = $region48
      $region47: #{tpu_custom_call.1} parent=5 // pred_region
        %s357 = ssub.s32 %s29, 2
        // Predicated region
        $region49: #{tpu_custom_call.1} parent=47 // pred_check
          %p358 = pneg %p161
        $region50: #{tpu_custom_call.1} parent=47 // pred_check_branch
          %360 = sbr.rel (%p358) target = $region52
        $region51: #{tpu_custom_call.1} parent=47 // pred_region
          %s361 = sand.u32 %s146, 1
          %s362 = scalar_lea.sflag [#allocation7], %s361
          %s363 = sand.u32 %s146, 1
          %s364 = smul.addr %s363, 8
          %s365 = scalar_lea.vmem [#allocation6], %s364
          %367 = dma.done %s362, 128
        $region52: #{tpu_custom_call.1} parent=47 // pred_fallthru
          _
      $region48: #{tpu_custom_call.1} parent=5 // pred_fallthru
        _
    $region6: #{tpu_custom_call.1} parent=1 // loop_footer
      %s33 = sadd.s32 1, %s29
    $region7: #{tpu_custom_call.1} parent=1 // loop_footer_branch
      %28 = sbr.rel target = $region3
    $region8: #{tpu_custom_call.1} parent=1 // loop_exit
      _
    %368 = vsyncpa [#allocation7], 1
    %s369 = scalar_lea.sflag [#allocation7], 1
    %370 = vsyncpa %s369, 1

</llo_original>
